<compile_context>
chip_gen: v7x
topology: tpu7x:2x2x1
jax: 0.10.0
libtpu: 0.0.40
codegen_flags: <defaults>
</compile_context>

<pallas_src>
import functools

import jax
import jax.numpy as jnp
from jax.experimental import pallas as pl
from jax.experimental.pallas import tpu as pltpu


def _smooth_l1_kernel(x_ref, y_ref, w_ref, out_ref, colbuf_ref, rowbuf_ref,
                      *, H, W, TB, NC):
    # x_ref, y_ref : (TB, H, W) input blocks                [VMEM, auto-pipelined]
    # w_ref        : (3, 3) effective stencil weights       [SMEM, scalar reads]
    # out_ref      : (1, 1, 1) per-block partial L1 sum     [VMEM]
    # colbuf_ref   : (TB, H+2, W) f32 H-direction staging   [VMEM scratch]
    # rowbuf_ref   : (TB, H, W+2) f32 W-direction staging   [VMEM scratch]

    # Single f32 upcast of x; every tap below derives from this one value.
    x32 = x_ref[...].astype(jnp.float32)

    # ---- Circular extension along H (sublane axis), built once on-chip ----
    colbuf_ref[:, 1:H + 1, :] = x32
    colbuf_ref[:, 0:1, :] = colbuf_ref[:, H:H + 1, :]        # row H-1 wraps to top
    colbuf_ref[:, H + 1:H + 2, :] = colbuf_ref[:, 1:2, :]    # row 0 wraps to bottom
    xu = colbuf_ref[:, 0:H, :]        # x[(h-1) % H, w]
    xd = colbuf_ref[:, 2:H + 2, :]    # x[(h+1) % H, w]

    # ---- Column pass: three partial sums sharing the three H-taps ----
    # cs_b[h, w] = sum_a w_eff[a, b] * x[(h+a-1) % H, w]
    cs0 = w_ref[0, 0] * xu + w_ref[1, 0] * x32 + w_ref[2, 0] * xd
    cs1 = w_ref[0, 1] * xu + w_ref[1, 1] * x32 + w_ref[2, 1] * xd
    cs2 = w_ref[0, 2] * xu + w_ref[1, 2] * x32 + w_ref[2, 2] * xd

    # ---- Row pass: circular W-shifts of cs0 / cs2 via the staging buffer ----
    # blended[h, w] = cs0[h, (w-1)%W] + cs1[h, w] + cs2[h, (w+1)%W]
    blended = cs1
    rowbuf_ref[:, :, 1:W + 1] = cs0
    rowbuf_ref[:, :, 0:1] = rowbuf_ref[:, :, W:W + 1]         # col W-1 wraps left
    blended = blended + rowbuf_ref[:, :, 0:W]                 # cs0 shifted right
    rowbuf_ref[:, :, 0:W] = cs2
    rowbuf_ref[:, :, W:W + 1] = rowbuf_ref[:, :, 0:1]         # col 0 wraps right
    blended = blended + rowbuf_ref[:, :, 1:W + 1]             # cs2 shifted left

    # ---- L1 partial sum for this block (w8 blend already folded into w_ref) ----
    y32 = y_ref[...].astype(jnp.float32)
    absdiff = jnp.abs(blended - y32)

    if NC % TB != 0:
        # Static (compile-time) ragged-tail handling: planes past NC in the last
        # block contain unspecified data; mask them out of the sum.
        plane = (jax.lax.broadcasted_iota(jnp.int32, (TB, H, W), 0)
                 + pl.program_id(0) * TB)
        absdiff = jnp.where(plane < NC, absdiff, 0.0)

    out_ref[...] = jnp.broadcast_to(jnp.sum(absdiff), (1, 1, 1))


def smooth_regular_loss(x, y, conv_w, w8, *, kernel_size=3, block_nc=None):
    """mode='W', loss='l1' branch of SmoothRegularLoss.forward (NCHW inputs)."""
    assert kernel_size == 3, "kernel hardcodes 3x3 taps"
    N, C, H, W = x.shape
    NC = N * C
    xf = x.reshape(NC, H, W)          # native dtype; kernel upcasts once to f32
    yf = y.reshape(NC, H, W)

    # TODO(synk): the PyTorch module samples torch.rand weights / w8 inside
    # forward; here they are explicit inputs (RNG stays outside the kernel).
    # Fold normalization and the w8 blend into one effective 3x3 stencil:
    #   w8 * (norm_w (*) x) + (1 - w8) * x  ==  w_eff (*) x
    w8 = jnp.asarray(w8, jnp.float32).reshape(())
    norm_w = (conv_w / jnp.sum(conv_w)).astype(jnp.float32)
    w_eff = w8 * norm_w
    w_eff = w_eff.at[1, 1].add(1.0 - w8)

    # Block over the fused N*C axis; each block carries the full (H, W) plane so
    # the circular wrap stays local.  Size by the *padded f32* working set
    # (~2 MiB per f32 block => ~28 MiB total with pipeline buffers, temporaries
    # and staging scratch), which is safe on v7x's 64 MiB VMEM and leaves lots
    # of headroom on v5e/v6e (128 MiB).  block_nc is exposed as a tuning knob.
    Hp = pl.cdiv(H, 8) * 8
    Wp = pl.cdiv(W, 128) * 128
    plane_f32 = Hp * Wp * 4
    if block_nc is None:
        block_nc = max(1, min(NC, (2 * 1024 * 1024) // max(1, plane_f32)))
        if NC > 1:
            # Keep >= 2 blocks so v7x's two TensorCores both get work.
            block_nc = min(block_nc, pl.cdiv(NC, 2))
    num_blocks = pl.cdiv(NC, block_nc)

    kernel = functools.partial(_smooth_l1_kernel, H=H, W=W, TB=block_nc, NC=NC)

    partials = pl.pallas_call(
        kernel,
        out_shape=jax.ShapeDtypeStruct((num_blocks, 1, 1), jnp.float32),
        grid=(num_blocks,),
        in_specs=[
            pl.BlockSpec((block_nc, H, W), lambda i: (i, 0, 0)),      # x block
            pl.BlockSpec((block_nc, H, W), lambda i: (i, 0, 0)),      # y block
            pl.BlockSpec(memory_space=pltpu.MemorySpace.SMEM),        # w_eff (3,3)
        ],
        out_specs=pl.BlockSpec((1, 1, 1), lambda i: (i, 0, 0)),       # partial sums
        scratch_shapes=[
            pltpu.VMEM((block_nc, H + 2, W), jnp.float32),            # H staging
            pltpu.VMEM((block_nc, H, W + 2), jnp.float32),            # W staging
        ],
        compiler_params=pltpu.CompilerParams(
            dimension_semantics=("parallel",),   # v7x shards blocks across 2 TCs
            vmem_limit_bytes=48 * 1024 * 1024,
        ),
    )(xf, yf, w_eff)

    # Tiny final reduction of per-block partials + mean normalization.
    return jnp.sum(partials) * (1.0 / float(N * C * H * W))


def _reference(x, y, conv_w, w8):
    # Plain-JAX reference of the same forward (for sanity checking).
    N, C, H, W = x.shape
    norm_w = conv_w / jnp.sum(conv_w)
    xp = jnp.pad(x, ((0, 0), (0, 0), (1, 1), (1, 1)), mode="wrap")
    mov = jnp.zeros_like(x)
    for a in range(3):
        for b in range(3):
            mov = mov + norm_w[a, b] * xp[:, :, a:a + H, b:b + W]
    blended = w8 * mov + (1.0 - w8) * x
    return jnp.mean(jnp.abs(blended - y))


if __name__ == "__main__":
    key = jax.random.PRNGKey(0)
    k1, k2, k3, k4 = jax.random.split(key, 4)

    N, C, H, W = 2, 4, 16, 16
    x = jax.random.normal(k1, (N, C, H, W), dtype=jnp.float32)
    y = jax.random.normal(k2, (N, C, H, W), dtype=jnp.float32)

    # Deterministic stand-ins for torch.rand(1,1,3,3) and 0.5*torch.rand(1).
    conv_w = jax.random.uniform(k3, (3, 3), dtype=jnp.float32)
    w8 = 0.5 * jax.random.uniform(k4, (), dtype=jnp.float32)

    loss = smooth_regular_loss(x, y, conv_w, w8)
    loss = jax.block_until_ready(loss)

    ref = _reference(x.astype(jnp.float32), y.astype(jnp.float32), conv_w, w8)
    assert abs(float(loss) - float(ref)) < 1e-5, (float(loss), float(ref))

    print("KERNEL_OK")
</pallas_src>

<mosaic_0001>
module attributes {stable_mosaic.version = 11 : i64} {
  func.func @_smooth_l1_kernel(%arg0: i32, %arg1: memref<4x16x16xf32, #tpu.memory_space<vmem>>, %arg2: memref<4x16x16xf32, #tpu.memory_space<vmem>>, %arg3: memref<3x3xf32, #tpu.memory_space<smem>>, %arg4: memref<1x1x1xf32, #tpu.memory_space<vmem>>, %arg5: memref<4x18x16xf32, #tpu.memory_space<vmem>>, %arg6: memref<4x16x18xf32, #tpu.memory_space<vmem>>) attributes {dimension_semantics = [#tpu.dimension_semantics<parallel>], iteration_bounds = array<i64: 2>, scalar_prefetch = 0 : i64, scratch_operands = 2 : i64, tpu.core_type = #tpu.core_type<tc>, window_params = [{transform_indices = @transform_0, window_bounds = array<i64: 4, 16, 16>}, {transform_indices = @transform_1, window_bounds = array<i64: 4, 16, 16>}, {transform_indices = @transform_2, window_bounds = array<i64: 3, 3>}, {transform_indices = @transform_3, window_bounds = array<i64: 1, 1, 1>}]} {
    %c0 = arith.constant 0 : index
    %c0_0 = arith.constant 0 : index
    %c0_1 = arith.constant 0 : index
    %0 = vector.load %arg1[%c0, %c0_0, %c0_1] : memref<4x16x16xf32, #tpu.memory_space<vmem>>, vector<4x16x16xf32>
    %c0_2 = arith.constant 0 : index
    %c1 = arith.constant 1 : index
    %c0_3 = arith.constant 0 : index
    %1 = vector.load %arg5[%c0_2, %c1, %c0_3] : memref<4x18x16xf32, #tpu.memory_space<vmem>>, vector<4x16x16xf32>
    tpu.vector_store %arg5[%c0_2, %c1, %c0_3], %0 {strides = array<i32>} : memref<4x18x16xf32, #tpu.memory_space<vmem>>, vector<4x16x16xf32>,
    %c0_4 = arith.constant 0 : index
    %c16 = arith.constant 16 : index
    %c0_5 = arith.constant 0 : index
    %2 = vector.load %arg5[%c0_4, %c16, %c0_5] : memref<4x18x16xf32, #tpu.memory_space<vmem>>, vector<4x1x16xf32>
    %c0_6 = arith.constant 0 : index
    %c0_7 = arith.constant 0 : index
    %c0_8 = arith.constant 0 : index
    %3 = vector.load %arg5[%c0_6, %c0_7, %c0_8] : memref<4x18x16xf32, #tpu.memory_space<vmem>>, vector<4x1x16xf32>
    tpu.vector_store %arg5[%c0_6, %c0_7, %c0_8], %2 {strides = array<i32>} : memref<4x18x16xf32, #tpu.memory_space<vmem>>, vector<4x1x16xf32>,
    %c0_9 = arith.constant 0 : index
    %c1_10 = arith.constant 1 : index
    %c0_11 = arith.constant 0 : index
    %4 = vector.load %arg5[%c0_9, %c1_10, %c0_11] : memref<4x18x16xf32, #tpu.memory_space<vmem>>, vector<4x1x16xf32>
    %c0_12 = arith.constant 0 : index
    %c17 = arith.constant 17 : index
    %c0_13 = arith.constant 0 : index
    %5 = vector.load %arg5[%c0_12, %c17, %c0_13] : memref<4x18x16xf32, #tpu.memory_space<vmem>>, vector<4x1x16xf32>
    tpu.vector_store %arg5[%c0_12, %c17, %c0_13], %4 {strides = array<i32>} : memref<4x18x16xf32, #tpu.memory_space<vmem>>, vector<4x1x16xf32>,
    %c0_14 = arith.constant 0 : index
    %c0_15 = arith.constant 0 : index
    %c0_16 = arith.constant 0 : index
    %6 = vector.load %arg5[%c0_14, %c0_15, %c0_16] : memref<4x18x16xf32, #tpu.memory_space<vmem>>, vector<4x16x16xf32>
    %c0_17 = arith.constant 0 : index
    %c2 = arith.constant 2 : index
    %c0_18 = arith.constant 0 : index
    %7 = vector.load %arg5[%c0_17, %c2, %c0_18] : memref<4x18x16xf32, #tpu.memory_space<vmem>>, vector<4x16x16xf32>
    %c0_19 = arith.constant 0 : index
    %c0_20 = arith.constant 0 : index
    %8 = memref.load %arg3[%c0_19, %c0_20] : memref<3x3xf32, #tpu.memory_space<smem>>
    %9 = vector.broadcast %8 : f32 to vector<4x16x16xf32>
    %10 = arith.mulf %9, %6 : vector<4x16x16xf32>
    %c1_21 = arith.constant 1 : index
    %c0_22 = arith.constant 0 : index
    %11 = memref.load %arg3[%c1_21, %c0_22] : memref<3x3xf32, #tpu.memory_space<smem>>
    %12 = vector.broadcast %11 : f32 to vector<4x16x16xf32>
    %13 = arith.mulf %12, %0 : vector<4x16x16xf32>
    %14 = arith.addf %10, %13 : vector<4x16x16xf32>
    %c2_23 = arith.constant 2 : index
    %c0_24 = arith.constant 0 : index
    %15 = memref.load %arg3[%c2_23, %c0_24] : memref<3x3xf32, #tpu.memory_space<smem>>
    %16 = vector.broadcast %15 : f32 to vector<4x16x16xf32>
    %17 = arith.mulf %16, %7 : vector<4x16x16xf32>
    %18 = arith.addf %14, %17 : vector<4x16x16xf32>
    %c0_25 = arith.constant 0 : index
    %c1_26 = arith.constant 1 : index
    %19 = memref.load %arg3[%c0_25, %c1_26] : memref<3x3xf32, #tpu.memory_space<smem>>
    %20 = vector.broadcast %19 : f32 to vector<4x16x16xf32>
    %21 = arith.mulf %20, %6 : vector<4x16x16xf32>
    %c1_27 = arith.constant 1 : index
    %c1_28 = arith.constant 1 : index
    %22 = memref.load %arg3[%c1_27, %c1_28] : memref<3x3xf32, #tpu.memory_space<smem>>
    %23 = vector.broadcast %22 : f32 to vector<4x16x16xf32>
    %24 = arith.mulf %23, %0 : vector<4x16x16xf32>
    %25 = arith.addf %21, %24 : vector<4x16x16xf32>
    %c2_29 = arith.constant 2 : index
    %c1_30 = arith.constant 1 : index
    %26 = memref.load %arg3[%c2_29, %c1_30] : memref<3x3xf32, #tpu.memory_space<smem>>
    %27 = vector.broadcast %26 : f32 to vector<4x16x16xf32>
    %28 = arith.mulf %27, %7 : vector<4x16x16xf32>
    %29 = arith.addf %25, %28 : vector<4x16x16xf32>
    %c0_31 = arith.constant 0 : index
    %c2_32 = arith.constant 2 : index
    %30 = memref.load %arg3[%c0_31, %c2_32] : memref<3x3xf32, #tpu.memory_space<smem>>
    %31 = vector.broadcast %30 : f32 to vector<4x16x16xf32>
    %32 = arith.mulf %31, %6 : vector<4x16x16xf32>
    %c1_33 = arith.constant 1 : index
    %c2_34 = arith.constant 2 : index
    %33 = memref.load %arg3[%c1_33, %c2_34] : memref<3x3xf32, #tpu.memory_space<smem>>
    %34 = vector.broadcast %33 : f32 to vector<4x16x16xf32>
    %35 = arith.mulf %34, %0 : vector<4x16x16xf32>
    %36 = arith.addf %32, %35 : vector<4x16x16xf32>
    %c2_35 = arith.constant 2 : index
    %c2_36 = arith.constant 2 : index
    %37 = memref.load %arg3[%c2_35, %c2_36] : memref<3x3xf32, #tpu.memory_space<smem>>
    %38 = vector.broadcast %37 : f32 to vector<4x16x16xf32>
    %39 = arith.mulf %38, %7 : vector<4x16x16xf32>
    %40 = arith.addf %36, %39 : vector<4x16x16xf32>
    %c0_37 = arith.constant 0 : index
    %c0_38 = arith.constant 0 : index
    %c1_39 = arith.constant 1 : index
    %41 = vector.load %arg6[%c0_37, %c0_38, %c1_39] : memref<4x16x18xf32, #tpu.memory_space<vmem>>, vector<4x16x16xf32>
    tpu.vector_store %arg6[%c0_37, %c0_38, %c1_39], %18 {strides = array<i32>} : memref<4x16x18xf32, #tpu.memory_space<vmem>>, vector<4x16x16xf32>,
    %c0_40 = arith.constant 0 : index
    %c0_41 = arith.constant 0 : index
    %c16_42 = arith.constant 16 : index
    %42 = vector.load %arg6[%c0_40, %c0_41, %c16_42] : memref<4x16x18xf32, #tpu.memory_space<vmem>>, vector<4x16x1xf32>
    %c0_43 = arith.constant 0 : index
    %c0_44 = arith.constant 0 : index
    %c0_45 = arith.constant 0 : index
    %43 = vector.load %arg6[%c0_43, %c0_44, %c0_45] : memref<4x16x18xf32, #tpu.memory_space<vmem>>, vector<4x16x1xf32>
    tpu.vector_store %arg6[%c0_43, %c0_44, %c0_45], %42 {strides = array<i32>} : memref<4x16x18xf32, #tpu.memory_space<vmem>>, vector<4x16x1xf32>,
    %c0_46 = arith.constant 0 : index
    %c0_47 = arith.constant 0 : index
    %c0_48 = arith.constant 0 : index
    %44 = vector.load %arg6[%c0_46, %c0_47, %c0_48] : memref<4x16x18xf32, #tpu.memory_space<vmem>>, vector<4x16x16xf32>
    %45 = arith.addf %29, %44 : vector<4x16x16xf32>
    %c0_49 = arith.constant 0 : index
    %c0_50 = arith.constant 0 : index
    %c0_51 = arith.constant 0 : index
    %46 = vector.load %arg6[%c0_49, %c0_50, %c0_51] : memref<4x16x18xf32, #tpu.memory_space<vmem>>, vector<4x16x16xf32>
    tpu.vector_store %arg6[%c0_49, %c0_50, %c0_51], %40 {strides = array<i32>} : memref<4x16x18xf32, #tpu.memory_space<vmem>>, vector<4x16x16xf32>,
    %c0_52 = arith.constant 0 : index
    %c0_53 = arith.constant 0 : index
    %c0_54 = arith.constant 0 : index
    %47 = vector.load %arg6[%c0_52, %c0_53, %c0_54] : memref<4x16x18xf32, #tpu.memory_space<vmem>>, vector<4x16x1xf32>
    %c0_55 = arith.constant 0 : index
    %c0_56 = arith.constant 0 : index
    %c16_57 = arith.constant 16 : index
    %48 = vector.load %arg6[%c0_55, %c0_56, %c16_57] : memref<4x16x18xf32, #tpu.memory_space<vmem>>, vector<4x16x1xf32>
    tpu.vector_store %arg6[%c0_55, %c0_56, %c16_57], %47 {strides = array<i32>} : memref<4x16x18xf32, #tpu.memory_space<vmem>>, vector<4x16x1xf32>,
    %c0_58 = arith.constant 0 : index
    %c0_59 = arith.constant 0 : index
    %c1_60 = arith.constant 1 : index
    %49 = vector.load %arg6[%c0_58, %c0_59, %c1_60] : memref<4x16x18xf32, #tpu.memory_space<vmem>>, vector<4x16x16xf32>
    %50 = arith.addf %45, %49 : vector<4x16x16xf32>
    %c0_61 = arith.constant 0 : index
    %c0_62 = arith.constant 0 : index
    %c0_63 = arith.constant 0 : index
    %51 = vector.load %arg2[%c0_61, %c0_62, %c0_63] : memref<4x16x16xf32, #tpu.memory_space<vmem>>, vector<4x16x16xf32>
    %52 = arith.subf %50, %51 : vector<4x16x16xf32>
    %53 = math.absf %52 : vector<4x16x16xf32>
    %54 = vector.shape_cast %53 : vector<4x16x16xf32> to vector<1x4x16x16xf32>
    %cst = arith.constant dense<0.000000e+00> : vector<1xf32>
    %55 = vector.multi_reduction <add>, %54, %cst [1, 2, 3] : vector<1x4x16x16xf32> to vector<1xf32>
    %56 = vector.shape_cast %55 : vector<1xf32> to vector<1x1x1x1xf32>
    %57 = vector.extract %56[0, 0, 0, 0] : f32 from vector<1x1x1x1xf32>
    %58 = vector.broadcast %57 : f32 to vector<1x1x1xf32>
    %c0_64 = arith.constant 0 : index
    %c0_65 = arith.constant 0 : index
    %c0_66 = arith.constant 0 : index
    %59 = vector.load %arg4[%c0_64, %c0_65, %c0_66] : memref<1x1x1xf32, #tpu.memory_space<vmem>>, vector<1x1x1xf32>
    tpu.vector_store %arg4[%c0_64, %c0_65, %c0_66], %58 {strides = array<i32>} : memref<1x1x1xf32, #tpu.memory_space<vmem>>, vector<1x1x1xf32>,
    return
  }
  func.func @transform_0(%arg0: i32) -> (i32, i32, i32) {
    %c0_i32 = arith.constant 0 : i32
    %c0_i32_0 = arith.constant 0 : i32
    %c0_i32_1 = arith.constant 0 : i32
    return %arg0, %c0_i32, %c0_i32_0 : i32, i32, i32
  }
  func.func @transform_1(%arg0: i32) -> (i32, i32, i32) {
    %c0_i32 = arith.constant 0 : i32
    %c0_i32_0 = arith.constant 0 : i32
    %c0_i32_1 = arith.constant 0 : i32
    return %arg0, %c0_i32, %c0_i32_0 : i32, i32, i32
  }
  func.func @transform_2(%arg0: i32) -> (i32, i32) {
    %c0_i32 = arith.constant 0 : i32
    %c0_i32_0 = arith.constant 0 : i32
    %c0_i32_1 = arith.constant 0 : i32
    return %c0_i32, %c0_i32_0 : i32, i32
  }
  func.func @transform_3(%arg0: i32) -> (i32, i32, i32) {
    %c0_i32 = arith.constant 0 : i32
    %c0_i32_0 = arith.constant 0 : i32
    %c0_i32_1 = arith.constant 0 : i32
    return %arg0, %c0_i32, %c0_i32_0 : i32, i32, i32
  }
}

</mosaic_0001>

<llo_original>
// kernel: tpu_custom_call.1
$region0: #{tpu_custom_call.1}
  #allocation0 [shape = 'u32[]', space=smem, size = 0x4, offset = 0x4, fixed_abs, tag = 'smem constant byte address 0x4 - core index']
  #allocation1 [shape = 'u32[144,128]{1,0:T(1,128)}', space=vmem, size = 0x12000, scoped, tag = 'internal scratch']
  #allocation2 [shape = 'f32[4,18,16]{2,1,0:T(8,128)}', space=vmem, size = 0xc000, scoped, tag = 'scratch operand']
  #allocation3 [shape = 'f32[4,16,18]{2,1,0:T(8,128)}', space=vmem, size = 0x8000, scoped, tag = 'scratch operand']
  %s0 = inlined_call_operand.hbm [shape: f32[8,16,16], index: 0, kind: input, shape index: {}]
  %s1 = inlined_call_operand.hbm [shape: f32[8,16,16], index: 1, kind: input, shape index: {}]
  %s2 = inlined_call_operand.vmem [shape: f32[3,3], index: 2, kind: input, shape index: {}]
  %s3 = inlined_call_operand.vmem [shape: f32[2,1,1], index: 3, kind: output, shape index: {}]
  %s4 = sld [smem:[#allocation0]]
  $region57: #{tpu_custom_call.1} parent=0
    _
  %s6 = ssub.s32 1, %s4
  %s7 = scalar_select 0, %s6, %s4
  $region1: #{tpu_custom_call.1} parent=0
    #allocation4 [shape = 'u8[65536]{0}', space=vmem, size = 0x10000, scoped, tag = 'input window, operand 0']
    #allocation5 [shape = 's32[2]{0}', space=sflag, size = 0x8, scoped, tag = 'scoped memory for tpu_custom_call.1']
    #allocation6 [shape = 's32[2]{0}', space=sflag, size = 0x8, scoped, tag = 'scoped memory for tpu_custom_call.1']
    #allocation7 [shape = 'u8[65536]{0}', space=vmem, size = 0x10000, scoped, tag = 'input window, operand 1']
    #allocation8 [shape = 's32[2]{0}', space=sflag, size = 0x8, scoped, tag = 'scoped memory for tpu_custom_call.1']
    #allocation9 [shape = 'u8[2048]{0}', space=smem, size = 0x800, scoped, tag = 'input window, operand 2, single buffered']
    %8 = vsyncpa [#allocation5], 0
    %s9 = scalar_lea.sflag [#allocation5], 1
    %10 = vsyncpa %s9, 0
    %11 = vsyncpa [#allocation8], 0
    %s12 = scalar_lea.sflag [#allocation8], 1
    %13 = vsyncpa %s12, 0
    %14 = vsyncpa [#allocation6], 0
    loop: start=0, step=1, limit=4
    $region2: #{tpu_custom_call.1} parent=1 // loop_pre_header
      _
    $region3: #{tpu_custom_call.1} parent=1 // loop_header
      %s16 = sphi 0, %s20
      %p17 = scmp.ge.s32.totalorder %s16, 4
      %s26 = sphi 0, %s28
      %s29 = sphi 0, %s26
      %s30 = sphi 0, %s29
      %s46 = sphi 0, %s30
      %s52 = sphi 0, %s54
      %s55 = sphi 0, %s52
      %s56 = sphi 0, %s55
      %s72 = sphi 0, %s56
      %s76 = sphi 0, %s76
      %s78 = sphi 0, %s76
      %s79 = sphi 0, %s78
      %s93 = sphi 0, %s79
      %s99 = sphi 0, %s101
      %s102 = sphi 0, %s99
      %s103 = sphi 0, %s102
      %s119 = sphi 0, %s103
    $region4: #{tpu_custom_call.1} parent=1 // loop_header_branch
      %19 = sbr.rel (%p17) target = $region8
    $region5: #{tpu_custom_call.1} parent=1 // loop_body
      %s21 = ssub.s32 %s16, 1
      %s22 = ssub.s32 %s16, 2
      %s23 = sadd.s32 %s16, 1
      %s24 = ssub.s32 %s16, %s23
      %p25 = scmp.eq.s32.totalorder %s24, 0
      %s27 = sadd.s32 %s26, 1
      %s28 = scalar_select %p25, %s26, %s27
      %p31 = pneg %p25
      %p32 = scmp.eq.s32.totalorder %s16, 1
      %p33 = por %p31, %p32
      %p34 = scmp.ne.s32.totalorder %s26, %s29
      %p35 = scmp.eq.s32.totalorder %s16, 0
      %p36 = por %p34, %p35
      %p37 = scmp.ne.s32.totalorder %s26, %s29
      %p38 = scmp.eq.s32.totalorder %s21, 1
      %p39 = por %p37, %p38
      %p40 = scmp.ne.s32.totalorder %s29, %s30
      %p41 = scmp.eq.s32.totalorder %s21, 0
      %p42 = por %p40, %p41
      %p43 = scmp.ne.s32.totalorder %s29, %s30
      %p44 = scmp.eq.s32.totalorder %s22, 1
      %p45 = por %p43, %p44
      %p47 = scmp.ne.s32.totalorder %s30, %s46
      %p48 = scmp.eq.s32.totalorder %s22, 0
      %p49 = por %p47, %p48
      %s50 = ssub.s32 %s16, %s23
      %p51 = scmp.eq.s32.totalorder %s50, 0
      %s53 = sadd.s32 %s52, 1
      %s54 = scalar_select %p51, %s52, %s53
      %p57 = pneg %p51
      %p58 = scmp.eq.s32.totalorder %s16, 1
      %p59 = por %p57, %p58
      %p60 = scmp.ne.s32.totalorder %s52, %s55
      %p61 = scmp.eq.s32.totalorder %s16, 0
      %p62 = por %p60, %p61
      %p63 = scmp.ne.s32.totalorder %s52, %s55
      %p64 = scmp.eq.s32.totalorder %s21, 1
      %p65 = por %p63, %p64
      %p66 = scmp.ne.s32.totalorder %s55, %s56
      %p67 = scmp.eq.s32.totalorder %s21, 0
      %p68 = por %p66, %p67
      %p69 = scmp.ne.s32.totalorder %s55, %s56
      %p70 = scmp.eq.s32.totalorder %s22, 1
      %p71 = por %p69, %p70
      %p73 = scmp.ne.s32.totalorder %s56, %s72
      %p74 = scmp.eq.s32.totalorder %s22, 0
      %p75 = por %p73, %p74
      %s77 = sadd.s32 %s76, 1
      %p80 = scmp.eq.s32.totalorder %s16, 1
      %p81 = scmp.ne.s32.totalorder %s76, %s78
      %p82 = scmp.eq.s32.totalorder %s16, 0
      %p83 = por %p81, %p82
      %p84 = scmp.ne.s32.totalorder %s76, %s78
      %p85 = scmp.eq.s32.totalorder %s21, 1
      %p86 = por %p84, %p85
      %p87 = scmp.ne.s32.totalorder %s78, %s79
      %p88 = scmp.eq.s32.totalorder %s21, 0
      %p89 = por %p87, %p88
      %p90 = scmp.ne.s32.totalorder %s78, %s79
      %p91 = scmp.eq.s32.totalorder %s22, 1
      %p92 = por %p90, %p91
      %p94 = scmp.ne.s32.totalorder %s79, %s93
      %p95 = scmp.eq.s32.totalorder %s22, 0
      %p96 = por %p94, %p95
      %s97 = ssub.s32 %s16, %s23
      %p98 = scmp.eq.s32.totalorder %s97, 0
      %s100 = sadd.s32 %s99, 1
      %s101 = scalar_select %p98, %s99, %s100
      %p104 = pneg %p98
      %p105 = scmp.eq.s32.totalorder %s16, 1
      %p106 = por %p104, %p105
      %p107 = scmp.ne.s32.totalorder %s99, %s102
      %p108 = scmp.eq.s32.totalorder %s16, 0
      %p109 = por %p107, %p108
      %p110 = scmp.ne.s32.totalorder %s99, %s102
      %p111 = scmp.eq.s32.totalorder %s21, 1
      %p112 = por %p110, %p111
      %p113 = scmp.ne.s32.totalorder %s102, %s103
      %p114 = scmp.eq.s32.totalorder %s21, 0
      %p115 = por %p113, %p114
      %p116 = scmp.ne.s32.totalorder %s102, %s103
      %p117 = scmp.eq.s32.totalorder %s22, 1
      %p118 = por %p116, %p117
      %p120 = scmp.ne.s32.totalorder %s103, %s119
      %p121 = scmp.eq.s32.totalorder %s22, 0
      %p122 = por %p120, %p121
      %p123 = scmp.le.s32.totalorder 1, %s16
      %p124 = scmp.lt.s32.totalorder %s16, 3
      %p125 = pnand %p123, %p124
      %p126 = pneg %p125
      // Predicated region
      $region9: #{tpu_custom_call.1} parent=5 // pred_check
        _
      $region10: #{tpu_custom_call.1} parent=5 // pred_check_branch
        %128 = sbr.rel (%p125) target = $region12
      $region11: #{tpu_custom_call.1} parent=5 // pred_region
        %s129 = ssub.s32 %s16, 1
        // Predicated region
        $region13: #{tpu_custom_call.1} parent=11 // pred_check
          %p130 = pneg %p89
        $region14: #{tpu_custom_call.1} parent=11 // pred_check_branch
          %132 = sbr.rel (%p130) target = $region16
        $region15: #{tpu_custom_call.1} parent=11 // pred_region
          %s134 = ssub.s32 64, 64
          %135 = vsyncadd [#allocation6], %s134
          %s137 = sshll.u32 %s2, 4
          %s138 = int_to_ptr.vmem [resolvable:$true] %s137
          %140 = dma.vmem_to_smem %s138, 64, [#allocation9], [#allocation6]
        $region16: #{tpu_custom_call.1} parent=11 // pred_fallthru
          _
      $region12: #{tpu_custom_call.1} parent=5 // pred_fallthru
        _
      %p141 = scmp.lt.s32.totalorder %s16, 2
      // Predicated region
      $region17: #{tpu_custom_call.1} parent=5 // pred_check
        %p142 = pneg %p141
      $region18: #{tpu_custom_call.1} parent=5 // pred_check_branch
        %144 = sbr.rel (%p142) target = $region20
      $region19: #{tpu_custom_call.1} parent=5 // pred_region
        // Predicated region
        $region21: #{tpu_custom_call.1} parent=19 // pred_check
          %p145 = pneg %p36
        $region22: #{tpu_custom_call.1} parent=19 // pred_check_branch
          %147 = sbr.rel (%p145) target = $region24
        $region23: #{tpu_custom_call.1} parent=19 // pred_region
          %s148 = sand.u32 %s26, 1
          %s149 = scalar_lea.sflag [#allocation5], %s148
          %s150 = sand.u32 %s26, 1
          %s151 = smul.addr %s150, 64
          %s152 = scalar_lea.vmem [#allocation4], %s151
          %s153 = smul.u32 4, %s16
          %s155 = ssub.s32 1024, 1024
          %156 = vsyncadd %s149, %s155
          %s157 = smul.addr %s153, 2
          %s158 = smul.addr %s157, 128
          %s159 = scalar_lea.hbm %s0, %s158
          %s160 = sshll.u32 %s152, 4
          %s161 = int_to_ptr.vmem [resolvable:$true] %s160
          %166 = dma.hbm_to_vmem [thread:$0]  %s159, 1024, %s161, %s149, 128, 128, 8
        $region24: #{tpu_custom_call.1} parent=19 // pred_fallthru
          _
        // Predicated region
        $region25: #{tpu_custom_call.1} parent=19 // pred_check
          %p167 = pneg %p62
        $region26: #{tpu_custom_call.1} parent=19 // pred_check_branch
          %169 = sbr.rel (%p167) target = $region28
        $region27: #{tpu_custom_call.1} parent=19 // pred_region
          %s170 = sand.u32 %s52, 1
          %s171 = scalar_lea.sflag [#allocation8], %s170
          %s172 = sand.u32 %s52, 1
          %s173 = smul.addr %s172, 64
          %s174 = scalar_lea.vmem [#allocation7], %s173
          %s175 = smul.u32 4, %s16
          %s177 = ssub.s32 1024, 1024
          %178 = vsyncadd %s171, %s177
          %s179 = smul.addr %s175, 2
          %s180 = smul.addr %s179, 128
          %s181 = scalar_lea.hbm %s1, %s180
          %s182 = sshll.u32 %s174, 4
          %s183 = int_to_ptr.vmem [resolvable:$true] %s182
          %188 = dma.hbm_to_vmem [thread:$0]  %s181, 1024, %s183, %s171, 128, 128, 8
        $region28: #{tpu_custom_call.1} parent=19 // pred_fallthru
          _
      $region20: #{tpu_custom_call.1} parent=5 // pred_fallthru
        _
      %p189 = scmp.le.s32.totalorder 1, %s16
      %p190 = scmp.lt.s32.totalorder %s16, 3
      %p191 = pnand %p189, %p190
      %p192 = pneg %p191
      // Predicated region
      $region29: #{tpu_custom_call.1} parent=5 // pred_check
        _
      $region30: #{tpu_custom_call.1} parent=5 // pred_check_branch
        %194 = sbr.rel (%p191) target = $region32
      $region31: #{tpu_custom_call.1} parent=5 // pred_region
        %s195 = ssub.s32 %s16, 1
        %s196 = sand.u32 %s29, 1
        %s197 = scalar_lea.sflag [#allocation5], %s196
        %s198 = sand.u32 %s29, 1
        %s199 = smul.addr %s198, 64
        %s200 = scalar_lea.vmem [#allocation4], %s199
        // Predicated region
        $region33: #{tpu_custom_call.1} parent=31 // pred_check
          %p201 = pneg %p42
        $region34: #{tpu_custom_call.1} parent=31 // pred_check_branch
          %203 = sbr.rel (%p201) target = $region36
        $region35: #{tpu_custom_call.1} parent=31 // pred_region
          %204 = dma.done %s197, 1024
        $region36: #{tpu_custom_call.1} parent=31 // pred_fallthru
          _
        %s205 = sand.u32 %s55, 1
        %s206 = scalar_lea.sflag [#allocation8], %s205
        %s207 = sand.u32 %s55, 1
        %s208 = smul.addr %s207, 64
        %s209 = scalar_lea.vmem [#allocation7], %s208
        // Predicated region
        $region37: #{tpu_custom_call.1} parent=31 // pred_check
          %p210 = pneg %p68
        $region38: #{tpu_custom_call.1} parent=31 // pred_check_branch
          %212 = sbr.rel (%p210) target = $region40
        $region39: #{tpu_custom_call.1} parent=31 // pred_region
          %213 = dma.done %s206, 1024
        $region40: #{tpu_custom_call.1} parent=31 // pred_fallthru
          _
        // Predicated region
        $region41: #{tpu_custom_call.1} parent=31 // pred_check
          %p214 = pneg %p89
        $region42: #{tpu_custom_call.1} parent=31 // pred_check_branch
          %216 = sbr.rel (%p214) target = $region44
        $region43: #{tpu_custom_call.1} parent=31 // pred_region
          %217 = dma.done [#allocation6], 64
        $region44: #{tpu_custom_call.1} parent=31 // pred_fallthru
          _
        %218 = sfence
        %s219 = sand.u32 %s29, 1
        %s220 = scalar_lea.sflag [#allocation5], %s219
        %s221 = sand.u32 %s29, 1
        %s222 = smul.addr %s221, 64
        %s223 = scalar_lea.vmem [#allocation4], %s222
        %p224 = pneg %p42
        %p225 = pneg %p39
        %s226 = sand.u32 %s55, 1
        %s227 = scalar_lea.sflag [#allocation8], %s226
        %s228 = sand.u32 %s55, 1
        %s229 = smul.addr %s228, 64
        %s230 = scalar_lea.vmem [#allocation7], %s229
        %p231 = pneg %p68
        %p232 = pneg %p65
        %p233 = pneg %p89
        %p234 = pneg %p86
        %p235 = pneg %p115
        %p236 = pneg %p112
        %p237 = scmp.lt.s32.totalorder %s21, 1
        %s238 = scalar_select %p237, %s21, 1
        %s239 = scalar_lea.vmem %s3, %s238
        %s240 = smul.u32 4, %s21
        %s241 = smul.u32 4, %s21
        %p242 = scmp.lt.s32.totalorder %s21, 1
        %s243 = scalar_select %p242, %s21, 1
        %s244 = scalar_lea.vmem %s3, %s243
        %v245 = vld [vmem:[%s200] sm:$0xff]
        %v246 = vld [vmem:[%s200 + $0x8] sm:$0xff]
        %v247 = vld [vmem:[%s200 + $0x10] sm:$0xff]
        %v248 = vld [vmem:[%s200 + $0x18] sm:$0xff]
        %v249 = vld [vmem:[%s200 + $0x20] sm:$0xff]
        %v250 = vld [vmem:[%s200 + $0x28] sm:$0xff]
        %v251 = vld [vmem:[%s200 + $0x30] sm:$0xff]
        %v252 = vld [vmem:[%s200 + $0x38] sm:$0xff]
        %vm253 = vcmask 130048
        %254 = vst.msk [vmem:[#allocation2 + $0x1] sm:$0xff] %vm253, %v245
        %255 = vst.msk [vmem:[#allocation2 + $0x9] sm:$0xff] %vm253, %v246
        %256 = vst.msk [vmem:[#allocation2 + $0x19] sm:$0xff] %vm253, %v247
        %257 = vst.msk [vmem:[#allocation2 + $0x21] sm:$0xff] %vm253, %v248
        %258 = vst.msk [vmem:[#allocation2 + $0x31] sm:$0xff] %vm253, %v249
        %259 = vst.msk [vmem:[#allocation2 + $0x39] sm:$0xff] %vm253, %v250
        %260 = vst.msk [vmem:[#allocation2 + $0x49] sm:$0xff] %vm253, %v251
        %261 = vst.msk [vmem:[#allocation2 + $0x51] sm:$0xff] %vm253, %v252
        %v262 = vld [vmem:[#allocation2 + $0x10] sm:$0x1]
        %v263 = vld [vmem:[#allocation2 + $0x28] sm:$0x1]
        %v264 = vld [vmem:[#allocation2 + $0x40] sm:$0x1]
        %v265 = vld [vmem:[#allocation2 + $0x58] sm:$0x1]
        %vm266 = vcmask 122880
        %267 = vst.msk [vmem:[#allocation2] sm:$0x1] %vm266, %v262
        %268 = vst.msk [vmem:[#allocation2 + $0x18] sm:$0x1] %vm266, %v263
        %269 = vst.msk [vmem:[#allocation2 + $0x30] sm:$0x1] %vm266, %v264
        %270 = vst.msk [vmem:[#allocation2 + $0x48] sm:$0x1] %vm266, %v265
        %v271 = vld [vmem:[#allocation2 + $0x1] sm:$0x1]
        %v272 = vld [vmem:[#allocation2 + $0x19] sm:$0x1]
        %v273 = vld [vmem:[#allocation2 + $0x31] sm:$0x1]
        %v274 = vld [vmem:[#allocation2 + $0x49] sm:$0x1]
        %275 = vst.msk [vmem:[#allocation2 + $0x11] sm:$0x1] %vm266, %v271
        %276 = vst.msk [vmem:[#allocation2 + $0x29] sm:$0x1] %vm266, %v272
        %277 = vst.msk [vmem:[#allocation2 + $0x41] sm:$0x1] %vm266, %v273
        %278 = vst.msk [vmem:[#allocation2 + $0x59] sm:$0x1] %vm266, %v274
        %v279 = vld [vmem:[#allocation2] sm:$0xff]
        %v280 = vld [vmem:[#allocation2 + $0x8] sm:$0xff]
        %v281 = vld [vmem:[#allocation2 + $0x18] sm:$0xff]
        %v282 = vld [vmem:[#allocation2 + $0x20] sm:$0xff]
        %v283 = vld [vmem:[#allocation2 + $0x30] sm:$0xff]
        %v284 = vld [vmem:[#allocation2 + $0x38] sm:$0xff]
        %v285 = vld [vmem:[#allocation2 + $0x48] sm:$0xff]
        %v286 = vld [vmem:[#allocation2 + $0x50] sm:$0xff]
        %v287 = vld [vmem:[#allocation2 + $0x2] sm:$0xff]
        %v288 = vld [vmem:[#allocation2 + $0xa] sm:$0xff]
        %v289 = vld [vmem:[#allocation2 + $0x1a] sm:$0xff]
        %v290 = vld [vmem:[#allocation2 + $0x22] sm:$0xff]
        %v291 = vld [vmem:[#allocation2 + $0x32] sm:$0xff]
        %v292 = vld [vmem:[#allocation2 + $0x3a] sm:$0xff]
        %v293 = vld [vmem:[#allocation2 + $0x4a] sm:$0xff]
        %v294 = vld [vmem:[#allocation2 + $0x52] sm:$0xff]
        %s295 = sld [smem:[#allocation9]]
        %v296 = vstv %s295
        %v297 = vmul.f32 %v296, %v279
        %v298 = vmul.f32 %v296, %v280
        %v299 = vmul.f32 %v296, %v281
        %v300 = vmul.f32 %v296, %v282
        %v301 = vmul.f32 %v296, %v283
        %v302 = vmul.f32 %v296, %v284
        %v303 = vmul.f32 %v296, %v285
        %v304 = vmul.f32 %v296, %v286
        %s305 = sld [smem:[#allocation9 + $0x80]]
        %v306 = vstv %s305
        %v307 = vmul.f32 %v306, %v245
        %v308 = vmul.f32 %v306, %v246
        %v309 = vmul.f32 %v306, %v247
        %v310 = vmul.f32 %v306, %v248
        %v311 = vmul.f32 %v306, %v249
        %v312 = vmul.f32 %v306, %v250
        %v313 = vmul.f32 %v306, %v251
        %v314 = vmul.f32 %v306, %v252
        %v315 = vadd.f32 %v297, %v307
        %v316 = vadd.f32 %v298, %v308
        %v317 = vadd.f32 %v299, %v309
        %v318 = vadd.f32 %v300, %v310
        %v319 = vadd.f32 %v301, %v311
        %v320 = vadd.f32 %v302, %v312
        %v321 = vadd.f32 %v303, %v313
        %v322 = vadd.f32 %v304, %v314
        %s323 = sld [smem:[#allocation9 + $0x100]]
        %v324 = vstv %s323
        %v325 = vmul.f32 %v324, %v287
        %v326 = vmul.f32 %v324, %v288
        %v327 = vmul.f32 %v324, %v289
        %v328 = vmul.f32 %v324, %v290
        %v329 = vmul.f32 %v324, %v291
        %v330 = vmul.f32 %v324, %v292
        %v331 = vmul.f32 %v324, %v293
        %v332 = vmul.f32 %v324, %v294
        %v333 = vadd.f32 %v315, %v325
        %v334 = vadd.f32 %v316, %v326
        %v335 = vadd.f32 %v317, %v327
        %v336 = vadd.f32 %v318, %v328
        %v337 = vadd.f32 %v319, %v329
        %v338 = vadd.f32 %v320, %v330
        %v339 = vadd.f32 %v321, %v331
        %v340 = vadd.f32 %v322, %v332
        %s341 = sld [smem:[#allocation9 + $0x1]]
        %v342 = vstv %s341
        %v343 = vmul.f32 %v342, %v279
        %v344 = vmul.f32 %v342, %v280
        %v345 = vmul.f32 %v342, %v281
        %v346 = vmul.f32 %v342, %v282
        %v347 = vmul.f32 %v342, %v283
        %v348 = vmul.f32 %v342, %v284
        %v349 = vmul.f32 %v342, %v285
        %v350 = vmul.f32 %v342, %v286
        %s351 = sld [smem:[#allocation9 + $0x81]]
        %v352 = vstv %s351
        %v353 = vmul.f32 %v352, %v245
        %v354 = vmul.f32 %v352, %v246
        %v355 = vmul.f32 %v352, %v247
        %v356 = vmul.f32 %v352, %v248
        %v357 = vmul.f32 %v352, %v249
        %v358 = vmul.f32 %v352, %v250
        %v359 = vmul.f32 %v352, %v251
        %v360 = vmul.f32 %v352, %v252
        %v361 = vadd.f32 %v343, %v353
        %v362 = vadd.f32 %v344, %v354
        %v363 = vadd.f32 %v345, %v355
        %v364 = vadd.f32 %v346, %v356
        %v365 = vadd.f32 %v347, %v357
        %v366 = vadd.f32 %v348, %v358
        %v367 = vadd.f32 %v349, %v359
        %v368 = vadd.f32 %v350, %v360
        %s369 = sld [smem:[#allocation9 + $0x101]]
        %v370 = vstv %s369
        %v371 = vmul.f32 %v370, %v287
        %v372 = vmul.f32 %v370, %v288
        %v373 = vmul.f32 %v370, %v289
        %v374 = vmul.f32 %v370, %v290
        %v375 = vmul.f32 %v370, %v291
        %v376 = vmul.f32 %v370, %v292
        %v377 = vmul.f32 %v370, %v293
        %v378 = vmul.f32 %v370, %v294
        %v379 = vadd.f32 %v361, %v371
        %v380 = vadd.f32 %v362, %v372
        %v381 = vadd.f32 %v363, %v373
        %v382 = vadd.f32 %v364, %v374
        %v383 = vadd.f32 %v365, %v375
        %v384 = vadd.f32 %v366, %v376
        %v385 = vadd.f32 %v367, %v377
        %v386 = vadd.f32 %v368, %v378
        %s387 = sld [smem:[#allocation9 + $0x2]]
        %v388 = vstv %s387
        %v389 = vmul.f32 %v388, %v279
        %v390 = vmul.f32 %v388, %v280
        %v391 = vmul.f32 %v388, %v281
        %v392 = vmul.f32 %v388, %v282
        %v393 = vmul.f32 %v388, %v283
        %v394 = vmul.f32 %v388, %v284
        %v395 = vmul.f32 %v388, %v285
        %v396 = vmul.f32 %v388, %v286
        %s397 = sld [smem:[#allocation9 + $0x82]]
        %v398 = vstv %s397
        %v399 = vmul.f32 %v398, %v245
        %v400 = vmul.f32 %v398, %v246
        %v401 = vmul.f32 %v398, %v247
        %v402 = vmul.f32 %v398, %v248
        %v403 = vmul.f32 %v398, %v249
        %v404 = vmul.f32 %v398, %v250
        %v405 = vmul.f32 %v398, %v251
        %v406 = vmul.f32 %v398, %v252
        %v407 = vadd.f32 %v389, %v399
        %v408 = vadd.f32 %v390, %v400
        %v409 = vadd.f32 %v391, %v401
        %v410 = vadd.f32 %v392, %v402
        %v411 = vadd.f32 %v393, %v403
        %v412 = vadd.f32 %v394, %v404
        %v413 = vadd.f32 %v395, %v405
        %v414 = vadd.f32 %v396, %v406
        %s415 = sld [smem:[#allocation9 + $0x102]]
        %v416 = vstv %s415
        %v417 = vmul.f32 %v416, %v287
        %v418 = vmul.f32 %v416, %v288
        %v419 = vmul.f32 %v416, %v289
        %v420 = vmul.f32 %v416, %v290
        %v421 = vmul.f32 %v416, %v291
        %v422 = vmul.f32 %v416, %v292
        %v423 = vmul.f32 %v416, %v293
        %v424 = vmul.f32 %v416, %v294
        %v425 = vadd.f32 %v407, %v417
        %v426 = vadd.f32 %v408, %v418
        %v427 = vadd.f32 %v409, %v419
        %v428 = vadd.f32 %v410, %v420
        %v429 = vadd.f32 %v411, %v421
        %v430 = vadd.f32 %v412, %v422
        %v431 = vadd.f32 %v413, %v423
        %v432 = vadd.f32 %v414, %v424
        %441 = vrot.lane.b32.xlu0 %v333, 1
        %v442 = vpop.permute.xlu0 %441
        %443 = vrot.lane.b32.xlu0 %v334, 1
        %v444 = vpop.permute.xlu0 %443
        %445 = vrot.lane.b32.xlu0 %v335, 1
        %v446 = vpop.permute.xlu0 %445
        %447 = vrot.lane.b32.xlu0 %v336, 1
        %v448 = vpop.permute.xlu0 %447
        %449 = vrot.lane.b32.xlu0 %v337, 1
        %v450 = vpop.permute.xlu0 %449
        %451 = vrot.lane.b32.xlu0 %v338, 1
        %v452 = vpop.permute.xlu0 %451
        %453 = vrot.lane.b32.xlu0 %v339, 1
        %v454 = vpop.permute.xlu0 %453
        %455 = vrot.lane.b32.xlu0 %v340, 1
        %v456 = vpop.permute.xlu0 %455
        %vm465 = vcmask 138248
        %466 = vst.msk [vmem:[#allocation3] sm:$0xff] %vm465, %v442
        %467 = vst.msk [vmem:[#allocation3 + $0x8] sm:$0xff] %vm465, %v444
        %468 = vst.msk [vmem:[#allocation3 + $0x10] sm:$0xff] %vm465, %v446
        %469 = vst.msk [vmem:[#allocation3 + $0x18] sm:$0xff] %vm465, %v448
        %470 = vst.msk [vmem:[#allocation3 + $0x20] sm:$0xff] %vm465, %v450
        %471 = vst.msk [vmem:[#allocation3 + $0x28] sm:$0xff] %vm465, %v452
        %472 = vst.msk [vmem:[#allocation3 + $0x30] sm:$0xff] %vm465, %v454
        %473 = vst.msk [vmem:[#allocation3 + $0x38] sm:$0xff] %vm465, %v456
        %v474 = vld [vmem:[#allocation3] sm:$0xff]
        %v475 = vld [vmem:[#allocation3 + $0x8] sm:$0xff]
        %v476 = vld [vmem:[#allocation3 + $0x10] sm:$0xff]
        %v477 = vld [vmem:[#allocation3 + $0x18] sm:$0xff]
        %v478 = vld [vmem:[#allocation3 + $0x20] sm:$0xff]
        %v479 = vld [vmem:[#allocation3 + $0x28] sm:$0xff]
        %v480 = vld [vmem:[#allocation3 + $0x30] sm:$0xff]
        %v481 = vld [vmem:[#allocation3 + $0x38] sm:$0xff]
        %490 = vrot.lane.b32.xlu0 %v474, 112
        %v491 = vpop.permute.xlu0 %490
        %492 = vrot.lane.b32.xlu0 %v475, 112
        %v493 = vpop.permute.xlu0 %492
        %494 = vrot.lane.b32.xlu0 %v476, 112
        %v495 = vpop.permute.xlu0 %494
        %496 = vrot.lane.b32.xlu0 %v477, 112
        %v497 = vpop.permute.xlu0 %496
        %498 = vrot.lane.b32.xlu0 %v478, 112
        %v499 = vpop.permute.xlu0 %498
        %500 = vrot.lane.b32.xlu0 %v479, 112
        %v501 = vpop.permute.xlu0 %500
        %502 = vrot.lane.b32.xlu0 %v480, 112
        %v503 = vpop.permute.xlu0 %502
        %504 = vrot.lane.b32.xlu0 %v481, 112
        %v505 = vpop.permute.xlu0 %504
        %vm514 = vcmask 7168
        %515 = vst.msk [vmem:[#allocation3] sm:$0xff] %vm514, %v491
        %516 = vst.msk [vmem:[#allocation3 + $0x8] sm:$0xff] %vm514, %v493
        %517 = vst.msk [vmem:[#allocation3 + $0x10] sm:$0xff] %vm514, %v495
        %518 = vst.msk [vmem:[#allocation3 + $0x18] sm:$0xff] %vm514, %v497
        %519 = vst.msk [vmem:[#allocation3 + $0x20] sm:$0xff] %vm514, %v499
        %520 = vst.msk [vmem:[#allocation3 + $0x28] sm:$0xff] %vm514, %v501
        %521 = vst.msk [vmem:[#allocation3 + $0x30] sm:$0xff] %vm514, %v503
        %522 = vst.msk [vmem:[#allocation3 + $0x38] sm:$0xff] %vm514, %v505
        %v523 = vld [vmem:[#allocation3] sm:$0xff]
        %v524 = vld [vmem:[#allocation3 + $0x8] sm:$0xff]
        %v525 = vld [vmem:[#allocation3 + $0x10] sm:$0xff]
        %v526 = vld [vmem:[#allocation3 + $0x18] sm:$0xff]
        %v527 = vld [vmem:[#allocation3 + $0x20] sm:$0xff]
        %v528 = vld [vmem:[#allocation3 + $0x28] sm:$0xff]
        %v529 = vld [vmem:[#allocation3 + $0x30] sm:$0xff]
        %v530 = vld [vmem:[#allocation3 + $0x38] sm:$0xff]
        %v531 = vadd.f32 %v379, %v523
        %v532 = vadd.f32 %v380, %v524
        %v533 = vadd.f32 %v381, %v525
        %v534 = vadd.f32 %v382, %v526
        %v535 = vadd.f32 %v383, %v527
        %v536 = vadd.f32 %v384, %v528
        %v537 = vadd.f32 %v385, %v529
        %v538 = vadd.f32 %v386, %v530
        %539 = vst.msk [vmem:[#allocation3] sm:$0xff] %vm253, %v425
        %540 = vst.msk [vmem:[#allocation3 + $0x8] sm:$0xff] %vm253, %v426
        %541 = vst.msk [vmem:[#allocation3 + $0x10] sm:$0xff] %vm253, %v427
        %542 = vst.msk [vmem:[#allocation3 + $0x18] sm:$0xff] %vm253, %v428
        %543 = vst.msk [vmem:[#allocation3 + $0x20] sm:$0xff] %vm253, %v429
        %544 = vst.msk [vmem:[#allocation3 + $0x28] sm:$0xff] %vm253, %v430
        %545 = vst.msk [vmem:[#allocation3 + $0x30] sm:$0xff] %vm253, %v431
        %546 = vst.msk [vmem:[#allocation3 + $0x38] sm:$0xff] %vm253, %v432
        %v547 = vld [vmem:[#allocation3] sm:$0xff]
        %v548 = vld [vmem:[#allocation3 + $0x8] sm:$0xff]
        %v549 = vld [vmem:[#allocation3 + $0x10] sm:$0xff]
        %v550 = vld [vmem:[#allocation3 + $0x18] sm:$0xff]
        %v551 = vld [vmem:[#allocation3 + $0x20] sm:$0xff]
        %v552 = vld [vmem:[#allocation3 + $0x28] sm:$0xff]
        %v553 = vld [vmem:[#allocation3 + $0x30] sm:$0xff]
        %v554 = vld [vmem:[#allocation3 + $0x38] sm:$0xff]
        %563 = vrot.lane.b32.xlu0 %v547, 16
        %v564 = vpop.permute.xlu0 %563
        %565 = vrot.lane.b32.xlu0 %v548, 16
        %v566 = vpop.permute.xlu0 %565
        %567 = vrot.lane.b32.xlu0 %v549, 16
        %v568 = vpop.permute.xlu0 %567
        %569 = vrot.lane.b32.xlu0 %v550, 16
        %v570 = vpop.permute.xlu0 %569
        %571 = vrot.lane.b32.xlu0 %v551, 16
        %v572 = vpop.permute.xlu0 %571
        %573 = vrot.lane.b32.xlu0 %v552, 16
        %v574 = vpop.permute.xlu0 %573
        %575 = vrot.lane.b32.xlu0 %v553, 16
        %v576 = vpop.permute.xlu0 %575
        %577 = vrot.lane.b32.xlu0 %v554, 16
        %v578 = vpop.permute.xlu0 %577
        %vm587 = vcmask 138368
        %588 = vst.msk [vmem:[#allocation3] sm:$0xff] %vm587, %v564
        %589 = vst.msk [vmem:[#allocation3 + $0x8] sm:$0xff] %vm587, %v566
        %590 = vst.msk [vmem:[#allocation3 + $0x10] sm:$0xff] %vm587, %v568
        %591 = vst.msk [vmem:[#allocation3 + $0x18] sm:$0xff] %vm587, %v570
        %592 = vst.msk [vmem:[#allocation3 + $0x20] sm:$0xff] %vm587, %v572
        %593 = vst.msk [vmem:[#allocation3 + $0x28] sm:$0xff] %vm587, %v574
        %594 = vst.msk [vmem:[#allocation3 + $0x30] sm:$0xff] %vm587, %v576
        %595 = vst.msk [vmem:[#allocation3 + $0x38] sm:$0xff] %vm587, %v578
        %v596 = vld [vmem:[#allocation3] sm:$0xff]
        %v597 = vld [vmem:[#allocation3 + $0x8] sm:$0xff]
        %v598 = vld [vmem:[#allocation3 + $0x10] sm:$0xff]
        %v599 = vld [vmem:[#allocation3 + $0x18] sm:$0xff]
        %v600 = vld [vmem:[#allocation3 + $0x20] sm:$0xff]
        %v601 = vld [vmem:[#allocation3 + $0x28] sm:$0xff]
        %v602 = vld [vmem:[#allocation3 + $0x30] sm:$0xff]
        %v603 = vld [vmem:[#allocation3 + $0x38] sm:$0xff]
        %612 = vrot.lane.b32.xlu0 %v596, 127
        %v613 = vpop.permute.xlu0 %612
        %614 = vrot.lane.b32.xlu0 %v597, 127
        %v615 = vpop.permute.xlu0 %614
        %616 = vrot.lane.b32.xlu0 %v598, 127
        %v617 = vpop.permute.xlu0 %616
        %618 = vrot.lane.b32.xlu0 %v599, 127
        %v619 = vpop.permute.xlu0 %618
        %620 = vrot.lane.b32.xlu0 %v600, 127
        %v621 = vpop.permute.xlu0 %620
        %622 = vrot.lane.b32.xlu0 %v601, 127
        %v623 = vpop.permute.xlu0 %622
        %624 = vrot.lane.b32.xlu0 %v602, 127
        %v625 = vpop.permute.xlu0 %624
        %626 = vrot.lane.b32.xlu0 %v603, 127
        %v627 = vpop.permute.xlu0 %626
        %v636 = vadd.f32 %v531, %v613
        %v637 = vadd.f32 %v532, %v615
        %v638 = vadd.f32 %v533, %v617
        %v639 = vadd.f32 %v534, %v619
        %v640 = vadd.f32 %v535, %v621
        %v641 = vadd.f32 %v536, %v623
        %v642 = vadd.f32 %v537, %v625
        %v643 = vadd.f32 %v538, %v627
        %v644 = vld [vmem:[%s209] sm:$0xff]
        %v645 = vld [vmem:[%s209 + $0x8] sm:$0xff]
        %v646 = vld [vmem:[%s209 + $0x10] sm:$0xff]
        %v647 = vld [vmem:[%s209 + $0x18] sm:$0xff]
        %v648 = vld [vmem:[%s209 + $0x20] sm:$0xff]
        %v649 = vld [vmem:[%s209 + $0x28] sm:$0xff]
        %v650 = vld [vmem:[%s209 + $0x30] sm:$0xff]
        %v651 = vld [vmem:[%s209 + $0x38] sm:$0xff]
        %v652 = vsub.f32 %v636, %v644
        %v653 = vsub.f32 %v637, %v645
        %v654 = vsub.f32 %v638, %v646
        %v655 = vsub.f32 %v639, %v647
        %v656 = vsub.f32 %v640, %v648
        %v657 = vsub.f32 %v641, %v649
        %v658 = vsub.f32 %v642, %v650
        %v659 = vsub.f32 %v643, %v651
        %v660 = vand.u32 2147483647, %v652
        %v661 = vand.u32 2147483647, %v653
        %v662 = vand.u32 2147483647, %v654
        %v663 = vand.u32 2147483647, %v655
        %v664 = vand.u32 2147483647, %v656
        %v665 = vand.u32 2147483647, %v657
        %v666 = vand.u32 2147483647, %v658
        %v667 = vand.u32 2147483647, %v659
        %v668 = vsel %vm253, %v660, 0.0
        %v669 = vsel %vm253, %v661, 0.0
        %v670 = vadd.f32 %v668, %v669
        %v671 = vsel %vm253, %v662, 0.0
        %v672 = vadd.f32 %v670, %v671
        %v673 = vsel %vm253, %v663, 0.0
        %v674 = vadd.f32 %v672, %v673
        %v675 = vsel %vm253, %v664, 0.0
        %v676 = vadd.f32 %v674, %v675
        %v677 = vsel %vm253, %v665, 0.0
        %v678 = vadd.f32 %v676, %v677
        %v679 = vsel %vm253, %v666, 0.0
        %v680 = vadd.f32 %v678, %v679
        %v681 = vsel %vm253, %v667, 0.0
        %v682 = vadd.f32 %v680, %v681
        %683 = vadd.xlane.f32.xlu0 %v682
        %v684 = vpop.xlane.xlu0 %683
        %v685 = vrot.slane %v684, 4
        %v686 = vadd.f32 %v684, %v685
        %v687 = vrot.slane %v686, 2
        %v688 = vadd.f32 %v686, %v687
        %v689 = vrot.slane %v688, 1
        %v690 = vadd.f32 %v688, %v689
        %s691 = vtos %v690
        %v692 = vstv %s691
        %vm693 = vcmask 0
        %694 = vst.msk [vmem:[%s244] sm:$0x1] %vm693, %v692
        %p695 = scmp.lt.s32.totalorder %s21, 1
        %s696 = scalar_select %p695, %s21, 1
        %s697 = scalar_lea.vmem %s3, %s696
        // Predicated region
        $region45: #{tpu_custom_call.1} parent=31 // pred_check
          %p698 = pneg %p112
        $region46: #{tpu_custom_call.1} parent=31 // pred_check_branch
          %700 = sbr.rel (%p698) target = $region48
        $region47: #{tpu_custom_call.1} parent=31 // pred_region
          _
        $region48: #{tpu_custom_call.1} parent=31 // pred_fallthru
          _
      $region32: #{tpu_custom_call.1} parent=5 // pred_fallthru
        _
      %p701 = scmp.le.s32.totalorder 2, %s16
      // Predicated region
      $region49: #{tpu_custom_call.1} parent=5 // pred_check
        %p702 = pneg %p701
      $region50: #{tpu_custom_call.1} parent=5 // pred_check_branch
        %704 = sbr.rel (%p702) target = $region52
      $region51: #{tpu_custom_call.1} parent=5 // pred_region
        %s705 = ssub.s32 %s16, 2
        // Predicated region
        $region53: #{tpu_custom_call.1} parent=51 // pred_check
          %p706 = pneg %p118
        $region54: #{tpu_custom_call.1} parent=51 // pred_check_branch
          %708 = sbr.rel (%p706) target = $region56
        $region55: #{tpu_custom_call.1} parent=51 // pred_region
          %p709 = scmp.lt.s32.totalorder %s22, 1
          %s710 = scalar_select %p709, %s22, 1
          %s711 = scalar_lea.vmem %s3, %s710
        $region56: #{tpu_custom_call.1} parent=51 // pred_fallthru
          _
      $region52: #{tpu_custom_call.1} parent=5 // pred_fallthru
        _
    $region6: #{tpu_custom_call.1} parent=1 // loop_footer
      %s20 = sadd.s32 1, %s16
    $region7: #{tpu_custom_call.1} parent=1 // loop_footer_branch
      %15 = sbr.rel target = $region3
    $region8: #{tpu_custom_call.1} parent=1 // loop_exit
      _
    %712 = vsyncpa [#allocation5], 1
    %s713 = scalar_lea.sflag [#allocation5], 1
    %714 = vsyncpa %s713, 1
    %715 = vsyncpa [#allocation8], 1
    %s716 = scalar_lea.sflag [#allocation8], 1
    %717 = vsyncpa %s716, 1
    %718 = vsyncpa [#allocation6], 1
    %s719 = scalar_lea.sflag [#allocation6], 1
    %720 = vsyncpa %s719, 1

</llo_original>
